<compile_context>
chip_gen: v5e
topology: v5e:2x2
jax: 0.10.0
libtpu: 0.0.40
codegen_flags: <defaults>
</compile_context>

<pallas_src>
import functools

import jax
import jax.numpy as jnp
from jax.experimental import pallas as pl
from jax.experimental.pallas import tpu as pltpu


_VMEM_BUDGET_BYTES = 40 * 1024 * 1024   # per-step working set target
_VMEM_LIMIT_BYTES = 48 * 1024 * 1024    # requested scoped-VMEM limit
_RESIDENT_W_BYTES = 16 * 1024 * 1024    # max double-buffered bf16 weight kept whole


def _round_up(x, m):
    return (x + m - 1) // m * m


# ----------------------------- Pallas kernel -------------------------------

def _matmul_bias_kernel(x_ref, w_ref, b_ref, o_ref):
    # x_ref: (tm, K) bf16, w_ref: (K, tn) bf16, b_ref: (1, tn) f32, o_ref: (tm, tn) f32
    y = jnp.dot(x_ref[...], w_ref[...], preferred_element_type=jnp.float32)
    o_ref[...] = (y + b_ref[...]).astype(o_ref.dtype)


def _choose_tiles(M, N, K, tm, tn):
    """Pick (tm, tn).  tn=None prefers a single VMEM-resident (K, N) weight block."""
    # N tiling: keep the whole weight resident when it is cheap to do so.
    if tn is None:
        tn = N if 2 * K * N * 2 <= _RESIDENT_W_BYTES else 512
    if tn >= N:
        tn = N                               # full dim -> always a legal block shape
    else:
        tn = min(_round_up(tn, 128), N)      # lane-dense

    # M tiling: big tiles, multiple of 16 (bf16 sublane packing), shrink to fit VMEM.
    if tm is None:
        tm = 512
    tm = _round_up(tm, 16)

    def step_bytes(tm_):
        m = min(tm_, M)
        return (2 * m * K * 2          # x tile, bf16, double-buffered
                + 2 * K * tn * 2       # weight block, bf16, double-buffered
                + 2 * tn * 4           # bias row
                + 2 * m * tn * 4)      # f32 output tile

    while tm > 16 and step_bytes(tm) > _VMEM_BUDGET_BYTES:
        tm = _round_up(max(16, tm // 2), 16)
    if tm >= M:
        tm = M

    # v7x megacore: keep >= 2 blocks along a parallel axis when there is enough work
    # (no-op on single-TC v5e/v6e).
    if M >= 32 and pl.cdiv(M, tm) == 1 and pl.cdiv(N, tn) == 1:
        tm = _round_up(pl.cdiv(M, 2), 16)
    return tm, tn


def matmul_bias(x, w, b, *, tm=None, tn=None, out_dtype=jnp.float32):
    """y = x @ w + b.  x:(M,K) bf16, w:(K,N) bf16, b:(N,) f32 -> (M,N) out_dtype."""
    M, K = x.shape
    K2, N = w.shape
    assert K == K2 and b.shape == (N,)

    tm, tn = _choose_tiles(M, N, K, tm, tn)
    grid = (pl.cdiv(M, tm), pl.cdiv(N, tn))

    cost = pl.CostEstimate(
        flops=2 * M * N * K,
        transcendentals=0,
        bytes_accessed=(M * K * 2 + K * N * 2 + N * 4
                        + M * N * jnp.dtype(out_dtype).itemsize))

    return pl.pallas_call(
        _matmul_bias_kernel,
        out_shape=jax.ShapeDtypeStruct((M, N), out_dtype),
        grid=grid,
        in_specs=[
            pl.BlockSpec((tm, K), lambda i, j: (i, 0)),
            # When tn == N the block index is constant -> the weight is fetched once
            # and stays resident in VMEM for the whole grid.
            pl.BlockSpec((K, tn), lambda i, j: (0, j)),
            pl.BlockSpec((1, tn), lambda i, j: (0, j)),
        ],
        out_specs=pl.BlockSpec((tm, tn), lambda i, j: (i, j)),
        compiler_params=pltpu.CompilerParams(
            dimension_semantics=("parallel", "parallel"),
            vmem_limit_bytes=_VMEM_LIMIT_BYTES),
        cost_estimate=cost,
    )(x, w, b.reshape(1, N))


# ------------------------------ im2col (XLA) --------------------------------

def _extract_patches(x, patch, stride):
    """Return (patches:(B*h*w, C*ph*pw), h, w). Column order = (c, ky, kx), matching
    PyTorch conv-weight.reshape(D, -1).  Materializes ONE HBM copy of the patches
    (kept in the input's dtype, i.e. bf16 on the fast path)."""
    B, C, H, W = x.shape
    ph, pw = patch
    sh, sw = stride
    h = (H - ph) // sh + 1
    w = (W - pw) // sw + 1
    if (sh, sw) == (ph, pw) and H == h * ph and W == w * pw:
        # non-overlapping conv == plain relayout
        p = x.reshape(B, C, h, ph, w, pw).transpose(0, 2, 4, 1, 3, 5)
        return p.reshape(B * h * w, C * ph * pw), h, w
    # general (possibly overlapping) stride: one fused patch-extraction op instead of
    # ph*pw strided slices.
    p = jax.lax.conv_general_dilated_patches(
        x, filter_shape=(ph, pw), window_strides=(sh, sw), padding="VALID",
        dimension_numbers=("NCHW", "OIHW", "NCHW"))      # (B, C*ph*pw, h, w)
    p = p.transpose(0, 2, 3, 1)                          # (B, h, w, C*ph*pw)
    return p.reshape(B * h * w, C * ph * pw), h, w


# ------------------------------- forward ------------------------------------

@functools.partial(jax.jit, static_argnames=("patch", "stride", "tm", "tn"))
def patch_embed_forward(x, w_conv, b_conv, *, patch, stride, tm=None, tn=None):
    """PatchEmbed_new_llava.forward: x:(B,C,H,W), w_conv:(D,C,ph,pw), b_conv:(D,)."""
    B, C, H, W = x.shape
    D = w_conv.shape[0]
    # Cast BEFORE im2col so the materialized patches buffer is bf16 (halves HBM traffic).
    xb = x.astype(jnp.bfloat16)
    patches, h, w = _extract_patches(xb, patch, stride)          # (B*h*w, C*ph*pw) bf16
    w2d = w_conv.reshape(D, -1).T.astype(jnp.bfloat16)           # (C*ph*pw, D) bf16
    tok = matmul_bias(patches, w2d, b_conv.astype(jnp.float32),
                      tm=tm, tn=tn)                              # (B*h*w, D) f32
    return tok.reshape(B, h * w, D)


# --------------------------------- driver ------------------------------------

if __name__ == "__main__":
    key = jax.random.PRNGKey(0)
    k1, k2, k3, k4, k5, k6 = jax.random.split(key, 6)

    def run_case(kx, kw, kb, *, B, C, H, W, D, patch, stride, tm=None, tn=None):
        x = jax.random.normal(kx, (B, C, H, W), dtype=jnp.float32)
        w_conv = (0.02 * jax.random.normal(kw, (D, C) + patch)).astype(jnp.float32)
        b_conv = (0.02 * jax.random.normal(kb, (D,))).astype(jnp.float32)

        out = patch_embed_forward(x, w_conv, b_conv, patch=patch, stride=stride,
                                  tm=tm, tn=tn)
        out = jax.block_until_ready(out)

        # Reference: f32 strided conv + flatten(2).transpose(1,2)
        ref = jax.lax.conv_general_dilated(
            x, w_conv, window_strides=stride, padding="VALID",
            dimension_numbers=("NCHW", "OIHW", "NCHW"),
            precision=jax.lax.Precision.HIGHEST)
        ref = ref + b_conv[None, :, None, None]
        Bo, Do, ho, wo = ref.shape
        ref = ref.reshape(Bo, Do, ho * wo).transpose(0, 2, 1)   # (B, h*w, D)

        assert out.shape == (B, ho * wo, D), (out.shape, (B, ho * wo, D))
        assert out.dtype == jnp.float32
        max_err = float(jnp.max(jnp.abs(out - ref)))
        assert jnp.allclose(out, ref, atol=3e-2, rtol=3e-2), max_err
        return out

    # Case A: audio-style usage (kernel == stride, in_chans=1); small forced tiles give
    # a (3 x 2) parallel grid with ragged edge blocks on both M and N.
    run_case(k1, k2, k3, B=2, C=1, H=80, W=64, D=192,
             patch=(16, 16), stride=(16, 16), tm=16, tn=128)

    # Case B: module-default-style overlapping stride (stride != patch), multi-channel;
    # default tiling -> whole weight resident in VMEM, single-block grid.
    run_case(k4, k5, k6, B=2, C=3, H=36, W=36, D=256,
             patch=(16, 16), stride=(10, 10))

    print("KERNEL_OK")
</pallas_src>

<mosaic_0001>
module attributes {stable_mosaic.version = 11 : i64} {
  func.func @_matmul_bias_kernel(%arg0: i32, %arg1: i32, %arg2: memref<16x256xbf16, #tpu.memory_space<vmem>>, %arg3: memref<256x128xbf16, #tpu.memory_space<vmem>>, %arg4: memref<1x128xf32, #tpu.memory_space<vmem>>, %arg5: memref<16x128xf32, #tpu.memory_space<vmem>>) attributes {dimension_semantics = [#tpu.dimension_semantics<parallel>, #tpu.dimension_semantics<parallel>], iteration_bounds = array<i64: 3, 2>, scalar_prefetch = 0 : i64, scratch_operands = 0 : i64, tpu.core_type = #tpu.core_type<tc>, window_params = [{transform_indices = @transform_0, window_bounds = array<i64: 16, 256>}, {transform_indices = @transform_1, window_bounds = array<i64: 256, 128>}, {transform_indices = @transform_2, window_bounds = array<i64: 1, 128>}, {transform_indices = @transform_3, window_bounds = array<i64: 16, 128>}]} {
    %c0 = arith.constant 0 : index
    %c0_0 = arith.constant 0 : index
    %0 = vector.load %arg2[%c0, %c0_0] : memref<16x256xbf16, #tpu.memory_space<vmem>>, vector<16x256xbf16>
    %c0_1 = arith.constant 0 : index
    %c0_2 = arith.constant 0 : index
    %1 = vector.load %arg3[%c0_1, %c0_2] : memref<256x128xbf16, #tpu.memory_space<vmem>>, vector<256x128xbf16>
    %cst = arith.constant dense<0.000000e+00> : vector<16x128xf32>
    %2 = tpu.matmul %0, %1, %cst {dimension_numbers = #tpu.dot_dimension_numbers<[1], [0], [0], [1], [0, 0, 1, 1], [], []>} : vector<16x256xbf16>, vector<256x128xbf16>, vector<16x128xf32> -> vector<16x128xf32>
    %c0_3 = arith.constant 0 : index
    %c0_4 = arith.constant 0 : index
    %3 = vector.load %arg4[%c0_3, %c0_4] : memref<1x128xf32, #tpu.memory_space<vmem>>, vector<1x128xf32>
    %4 = vector.broadcast %3 : vector<1x128xf32> to vector<16x128xf32>
    %5 = arith.addf %2, %4 : vector<16x128xf32>
    %c0_5 = arith.constant 0 : index
    %c0_6 = arith.constant 0 : index
    %6 = vector.load %arg5[%c0_5, %c0_6] : memref<16x128xf32, #tpu.memory_space<vmem>>, vector<16x128xf32>
    tpu.vector_store %arg5[%c0_5, %c0_6], %5 {strides = array<i32>} : memref<16x128xf32, #tpu.memory_space<vmem>>, vector<16x128xf32>,
    return
  }
  func.func @transform_0(%arg0: i32, %arg1: i32) -> (i32, i32) {
    %c0_i32 = arith.constant 0 : i32
    %c0_i32_0 = arith.constant 0 : i32
    return %arg0, %c0_i32 : i32, i32
  }
  func.func @transform_1(%arg0: i32, %arg1: i32) -> (i32, i32) {
    %c0_i32 = arith.constant 0 : i32
    %c0_i32_0 = arith.constant 0 : i32
    return %c0_i32, %arg1 : i32, i32
  }
  func.func @transform_2(%arg0: i32, %arg1: i32) -> (i32, i32) {
    %c0_i32 = arith.constant 0 : i32
    %c0_i32_0 = arith.constant 0 : i32
    return %c0_i32, %arg1 : i32, i32
  }
  func.func @transform_3(%arg0: i32, %arg1: i32) -> (i32, i32) {
    %c0_i32 = arith.constant 0 : i32
    return %arg0, %arg1 : i32, i32
  }
}

</mosaic_0001>

<llo_original>
// kernel: patch_embed_forward.1
$region0: #{patch_embed_forward.1}
  #allocation0 [shape = 'u32[]', space=smem, size = 0x4, offset = 0x4, fixed_abs, tag = 'smem constant byte address 0x4 - core index']
  #allocation1 [shape = 'u32[72,128]{1,0:T(1,128)}', space=vmem, size = 0x9000, scoped, tag = 'internal scratch']
  %s0 = inlined_call_operand.vmem [shape: bf16[40,256], index: 0, kind: input, shape index: {}]
  %s1 = inlined_call_operand.vmem [shape: bf16[256,192], index: 1, kind: input, shape index: {}]
  %s2 = inlined_call_operand.vmem [shape: f32[1,192], index: 2, kind: input, shape index: {}]
  %s3 = inlined_call_operand.vmem [shape: f32[40,192], index: 3, kind: output, shape index: {}]
  %s4 = sld [smem:[#allocation0]]
  $region134: #{patch_embed_forward.1} parent=0
    _
  %s6 = ssub.s32 1, %s4
  %s7 = scalar_select 0, %s6, %s4
  $region1: #{patch_embed_forward.1} parent=0
    #allocation2 [shape = 'u8[131072]{0}', space=vmem, size = 0x20000, scoped, tag = 'input window, operand 1']
    #allocation3 [shape = 'u8[16384]{0}', space=vmem, size = 0x4000, scoped, tag = 'output window, operand 0']
    loop: start=0, step=1, limit=8
    $region2: #{patch_embed_forward.1} parent=1 // loop_pre_header
      _
    $region3: #{patch_embed_forward.1} parent=1 // loop_header
      %s9 = sphi 0, %s13
      %p10 = scmp.ge.s32.totalorder %s9, 8
      %s16 = sphi 0, %s28
      %s17 = sphi 0, %s24
      %s18 = sphi 0, %s16
      %s19 = sphi 0, %s17
      %s20 = sphi 0, %s18
      %s21 = sphi 0, %s19
      %s31 = sphi 0, %s33
      %s34 = sphi 0, %s31
      %s35 = sphi 0, %s34
      %s51 = sphi 0, %s35
      %s57 = sphi 0, %s59
      %s60 = sphi 0, %s57
      %s61 = sphi 0, %s60
      %s77 = sphi 0, %s61
      %s83 = sphi 0, %s85
      %s86 = sphi 0, %s83
      %s87 = sphi 0, %s86
      %s103 = sphi 0, %s87
      %s111 = sphi 0, %s113
      %s114 = sphi 0, %s111
      %s115 = sphi 0, %s114
      %s131 = sphi 0, %s115
    $region4: #{patch_embed_forward.1} parent=1 // loop_header_branch
      %12 = sbr.rel (%p10) target = $region8
    $region5: #{patch_embed_forward.1} parent=1 // loop_body
      %s14 = ssub.s32 %s9, 1
      %s15 = ssub.s32 %s9, 2
      %s22 = sadd.s32 1, %s17
      %p23 = scmp.ge.s32.totalorder %s22, 2
      %s24 = scalar_select %p23, 0, %s22
      %s25 = sadd.s32 1, %s16
      %s26 = scalar_select %p23, %s25, %s16
      %p27 = scmp.ge.s32.totalorder %s26, 3
      %s28 = scalar_select %p27, 0, %s26
      %s29 = ssub.s32 %s16, %s28
      %p30 = scmp.eq.s32.totalorder %s29, 0
      %s32 = sadd.s32 %s31, 1
      %s33 = scalar_select %p30, %s31, %s32
      %p36 = pneg %p30
      %p37 = scmp.eq.s32.totalorder %s9, 5
      %p38 = por %p36, %p37
      %p39 = scmp.ne.s32.totalorder %s31, %s34
      %p40 = scmp.eq.s32.totalorder %s9, 0
      %p41 = por %p39, %p40
      %p42 = scmp.ne.s32.totalorder %s31, %s34
      %p43 = scmp.eq.s32.totalorder %s14, 5
      %p44 = por %p42, %p43
      %p45 = scmp.ne.s32.totalorder %s34, %s35
      %p46 = scmp.eq.s32.totalorder %s14, 0
      %p47 = por %p45, %p46
      %p48 = scmp.ne.s32.totalorder %s34, %s35
      %p49 = scmp.eq.s32.totalorder %s15, 5
      %p50 = por %p48, %p49
      %p52 = scmp.ne.s32.totalorder %s35, %s51
      %p53 = scmp.eq.s32.totalorder %s15, 0
      %p54 = por %p52, %p53
      %s55 = ssub.s32 %s17, %s24
      %p56 = scmp.eq.s32.totalorder %s55, 0
      %s58 = sadd.s32 %s57, 1
      %s59 = scalar_select %p56, %s57, %s58
      %p62 = pneg %p56
      %p63 = scmp.eq.s32.totalorder %s9, 5
      %p64 = por %p62, %p63
      %p65 = scmp.ne.s32.totalorder %s57, %s60
      %p66 = scmp.eq.s32.totalorder %s9, 0
      %p67 = por %p65, %p66
      %p68 = scmp.ne.s32.totalorder %s57, %s60
      %p69 = scmp.eq.s32.totalorder %s14, 5
      %p70 = por %p68, %p69
      %p71 = scmp.ne.s32.totalorder %s60, %s61
      %p72 = scmp.eq.s32.totalorder %s14, 0
      %p73 = por %p71, %p72
      %p74 = scmp.ne.s32.totalorder %s60, %s61
      %p75 = scmp.eq.s32.totalorder %s15, 5
      %p76 = por %p74, %p75
      %p78 = scmp.ne.s32.totalorder %s61, %s77
      %p79 = scmp.eq.s32.totalorder %s15, 0
      %p80 = por %p78, %p79
      %s81 = ssub.s32 %s17, %s24
      %p82 = scmp.eq.s32.totalorder %s81, 0
      %s84 = sadd.s32 %s83, 1
      %s85 = scalar_select %p82, %s83, %s84
      %p88 = pneg %p82
      %p89 = scmp.eq.s32.totalorder %s9, 5
      %p90 = por %p88, %p89
      %p91 = scmp.ne.s32.totalorder %s83, %s86
      %p92 = scmp.eq.s32.totalorder %s9, 0
      %p93 = por %p91, %p92
      %p94 = scmp.ne.s32.totalorder %s83, %s86
      %p95 = scmp.eq.s32.totalorder %s14, 5
      %p96 = por %p94, %p95
      %p97 = scmp.ne.s32.totalorder %s86, %s87
      %p98 = scmp.eq.s32.totalorder %s14, 0
      %p99 = por %p97, %p98
      %p100 = scmp.ne.s32.totalorder %s86, %s87
      %p101 = scmp.eq.s32.totalorder %s15, 5
      %p102 = por %p100, %p101
      %p104 = scmp.ne.s32.totalorder %s87, %s103
      %p105 = scmp.eq.s32.totalorder %s15, 0
      %p106 = por %p104, %p105
      %s107 = ssub.s32 %s16, %s28
      %s108 = ssub.s32 %s17, %s24
      %s109 = sor.u32 %s107, %s108
      %p110 = scmp.eq.s32.totalorder %s109, 0
      %s112 = sadd.s32 %s111, 1
      %s113 = scalar_select %p110, %s111, %s112
      %p116 = pneg %p110
      %p117 = scmp.eq.s32.totalorder %s9, 5
      %p118 = por %p116, %p117
      %p119 = scmp.ne.s32.totalorder %s111, %s114
      %p120 = scmp.eq.s32.totalorder %s9, 0
      %p121 = por %p119, %p120
      %p122 = scmp.ne.s32.totalorder %s111, %s114
      %p123 = scmp.eq.s32.totalorder %s14, 5
      %p124 = por %p122, %p123
      %p125 = scmp.ne.s32.totalorder %s114, %s115
      %p126 = scmp.eq.s32.totalorder %s14, 0
      %p127 = por %p125, %p126
      %p128 = scmp.ne.s32.totalorder %s114, %s115
      %p129 = scmp.eq.s32.totalorder %s15, 5
      %p130 = por %p128, %p129
      %p132 = scmp.ne.s32.totalorder %s115, %s131
      %p133 = scmp.eq.s32.totalorder %s15, 0
      %p134 = por %p132, %p133
      %p135 = scmp.le.s32.totalorder 1, %s9
      %p136 = scmp.lt.s32.totalorder %s9, 7
      %p137 = pnand %p135, %p136
      %p138 = pneg %p137
      // Predicated region
      $region9: #{patch_embed_forward.1} parent=5 // pred_check
        _
      $region10: #{patch_embed_forward.1} parent=5 // pred_check_branch
        %140 = sbr.rel (%p137) target = $region12
      $region11: #{patch_embed_forward.1} parent=5 // pred_region
        %s141 = ssub.s32 %s9, 1
      $region12: #{patch_embed_forward.1} parent=5 // pred_fallthru
        _
      %p142 = scmp.lt.s32.totalorder %s9, 6
      // Predicated region
      $region13: #{patch_embed_forward.1} parent=5 // pred_check
        %p143 = pneg %p142
      $region14: #{patch_embed_forward.1} parent=5 // pred_check_branch
        %145 = sbr.rel (%p143) target = $region16
      $region15: #{patch_embed_forward.1} parent=5 // pred_region
        // Predicated region
        $region17: #{patch_embed_forward.1} parent=15 // pred_check
          %p146 = pneg %p41
        $region18: #{patch_embed_forward.1} parent=15 // pred_check_branch
          %148 = sbr.rel (%p146) target = $region20
        $region19: #{patch_embed_forward.1} parent=15 // pred_region
          %s149 = smul.u32 2, %s16
          %s150 = ssub.s32 5, %s149
          %p151 = scmp.lt.s32.totalorder %s150, 2
          %s152 = scalar_select %p151, %s150, 2
          %s153 = smul.u32 4, %s152
          %s154 = smul.u32 %s153, 2
          %p155 = scmp.lt.s32.totalorder %s149, 4
          %s156 = scalar_select %p155, %s149, 4
          %s157 = smul.addr %s156, 2
          %s158 = smul.addr %s157, 4
          %s159 = scalar_lea.vmem %s0, %s158
          %s160 = smul.u32 2, %s16
          %s161 = ssub.s32 5, %s160
          %p162 = scmp.lt.s32.totalorder %s161, 2
          %s163 = scalar_select %p162, %s161, 2
          %s164 = smul.u32 4, %s163
          %s165 = smul.u32 %s164, 2
        $region20: #{patch_embed_forward.1} parent=15 // pred_fallthru
          _
        // Predicated region
        $region21: #{patch_embed_forward.1} parent=15 // pred_check
          %p166 = pneg %p67
        $region22: #{patch_embed_forward.1} parent=15 // pred_check_branch
          %168 = sbr.rel (%p166) target = $region24
        $region23: #{patch_embed_forward.1} parent=15 // pred_region
          %s169 = sand.u32 %s57, 1
          %s170 = sand.u32 %s57, 1
          %s171 = smul.addr %s170, 128
          %s172 = scalar_lea.vmem [#allocation2], %s171
          %s173 = smul.addr %s17, 4
          %s174 = scalar_lea.vmem %s1, %s173
          // Predicated region
          $region25: #{patch_embed_forward.1} parent=23 // pred_check
            _
          $region26: #{patch_embed_forward.1} parent=23 // pred_check_branch
            %176 = sbr.rel (0) target = $region28
          $region27: #{patch_embed_forward.1} parent=23 // pred_region
            // Predicated region
            $region29: #{patch_embed_forward.1} parent=27 // pred_check
              _
            $region30: #{patch_embed_forward.1} parent=27 // pred_check_branch
              %178 = sbr.rel target = $region32
            $region31: #{patch_embed_forward.1} parent=27 // pred_region
              // Predicated region
              $region44: #{patch_embed_forward.1} parent=31 // pred_check
                _
              $region45: #{patch_embed_forward.1} parent=31 // pred_check_branch
                %256 = sbr.rel (0) target = $region47
              $region46: #{patch_embed_forward.1} parent=31 // pred_region
                loop: start=0, step=1, limit=1
                $region48: #{patch_embed_forward.1} parent=46 // loop_pre_header
                  _
                $region49: #{patch_embed_forward.1} parent=46 // loop_header
                  %s258 = sphi 0, %s262
                  %p259 = scmp.ge.s32.totalorder %s258, 1
                  %s263 = sphi %s174, %s174
                  %s264 = sphi %s172, %s172
                $region50: #{patch_embed_forward.1} parent=46 // loop_header_branch
                  %261 = sbr.rel (%p259) target = $region54
                $region51: #{patch_embed_forward.1} parent=46 // loop_body
                  _
                $region52: #{patch_embed_forward.1} parent=46 // loop_footer
                  %s262 = sadd.s32 1, %s258
                $region53: #{patch_embed_forward.1} parent=46 // loop_footer_branch
                  %257 = sbr.rel target = $region49
                $region54: #{patch_embed_forward.1} parent=46 // loop_exit
                  _
                %s266 = ssub.s32 16, 1
                loop: start=0, step=1, limit=1
                $region55: #{patch_embed_forward.1} parent=46 // loop_pre_header
                  _
                $region56: #{patch_embed_forward.1} parent=46 // loop_header
                  %s268 = sphi 0, %s272
                  %p269 = scmp.ge.s32.totalorder %s268, 1
                  %s273 = sphi %s174, %s174
                  %s274 = sphi %s172, %s172
                $region57: #{patch_embed_forward.1} parent=46 // loop_header_branch
                  %271 = sbr.rel (%p269) target = $region61
                $region58: #{patch_embed_forward.1} parent=46 // loop_body
                  %v275 = vld [vmem:[%s273] sm:%s266]
                  %276 = vst [vmem:[%s274] sm:%s266] %v275
                  %v277 = vld [vmem:[%s273 + $0x8] sm:%s266]
                  %278 = vst [vmem:[%s274 + $0x4] sm:%s266] %v277
                  %v279 = vld [vmem:[%s273 + $0x10] sm:%s266]
                  %280 = vst [vmem:[%s274 + $0x8] sm:%s266] %v279
                  %v281 = vld [vmem:[%s273 + $0x18] sm:%s266]
                  %282 = vst [vmem:[%s274 + $0xc] sm:%s266] %v281
                  %v283 = vld [vmem:[%s273 + $0x20] sm:%s266]
                  %284 = vst [vmem:[%s274 + $0x10] sm:%s266] %v283
                  %v285 = vld [vmem:[%s273 + $0x28] sm:%s266]
                  %286 = vst [vmem:[%s274 + $0x14] sm:%s266] %v285
                  %v287 = vld [vmem:[%s273 + $0x30] sm:%s266]
                  %288 = vst [vmem:[%s274 + $0x18] sm:%s266] %v287
                  %v289 = vld [vmem:[%s273 + $0x38] sm:%s266]
                  %290 = vst [vmem:[%s274 + $0x1c] sm:%s266] %v289
                  %v291 = vld [vmem:[%s273 + $0x40] sm:%s266]
                  %292 = vst [vmem:[%s274 + $0x20] sm:%s266] %v291
                  %v293 = vld [vmem:[%s273 + $0x48] sm:%s266]
                  %294 = vst [vmem:[%s274 + $0x24] sm:%s266] %v293
                  %v295 = vld [vmem:[%s273 + $0x50] sm:%s266]
                  %296 = vst [vmem:[%s274 + $0x28] sm:%s266] %v295
                  %v297 = vld [vmem:[%s273 + $0x58] sm:%s266]
                  %298 = vst [vmem:[%s274 + $0x2c] sm:%s266] %v297
                  %v299 = vld [vmem:[%s273 + $0x60] sm:%s266]
                  %300 = vst [vmem:[%s274 + $0x30] sm:%s266] %v299
                  %v301 = vld [vmem:[%s273 + $0x68] sm:%s266]
                  %302 = vst [vmem:[%s274 + $0x34] sm:%s266] %v301
                  %v303 = vld [vmem:[%s273 + $0x70] sm:%s266]
                  %304 = vst [vmem:[%s274 + $0x38] sm:%s266] %v303
                  %v305 = vld [vmem:[%s273 + $0x78] sm:%s266]
                  %306 = vst [vmem:[%s274 + $0x3c] sm:%s266] %v305
                  %v307 = vld [vmem:[%s273 + $0x80] sm:%s266]
                  %308 = vst [vmem:[%s274 + $0x40] sm:%s266] %v307
                  %v309 = vld [vmem:[%s273 + $0x88] sm:%s266]
                  %310 = vst [vmem:[%s274 + $0x44] sm:%s266] %v309
                  %v311 = vld [vmem:[%s273 + $0x90] sm:%s266]
                  %312 = vst [vmem:[%s274 + $0x48] sm:%s266] %v311
                  %v313 = vld [vmem:[%s273 + $0x98] sm:%s266]
                  %314 = vst [vmem:[%s274 + $0x4c] sm:%s266] %v313
                  %v315 = vld [vmem:[%s273 + $0xa0] sm:%s266]
                  %316 = vst [vmem:[%s274 + $0x50] sm:%s266] %v315
                  %v317 = vld [vmem:[%s273 + $0xa8] sm:%s266]
                  %318 = vst [vmem:[%s274 + $0x54] sm:%s266] %v317
                  %v319 = vld [vmem:[%s273 + $0xb0] sm:%s266]
                  %320 = vst [vmem:[%s274 + $0x58] sm:%s266] %v319
                  %v321 = vld [vmem:[%s273 + $0xb8] sm:%s266]
                  %322 = vst [vmem:[%s274 + $0x5c] sm:%s266] %v321
                  %v323 = vld [vmem:[%s273 + $0xc0] sm:%s266]
                  %324 = vst [vmem:[%s274 + $0x60] sm:%s266] %v323
                  %v325 = vld [vmem:[%s273 + $0xc8] sm:%s266]
                  %326 = vst [vmem:[%s274 + $0x64] sm:%s266] %v325
                  %v327 = vld [vmem:[%s273 + $0xd0] sm:%s266]
                  %328 = vst [vmem:[%s274 + $0x68] sm:%s266] %v327
                  %v329 = vld [vmem:[%s273 + $0xd8] sm:%s266]
                  %330 = vst [vmem:[%s274 + $0x6c] sm:%s266] %v329
                  %v331 = vld [vmem:[%s273 + $0xe0] sm:%s266]
                  %332 = vst [vmem:[%s274 + $0x70] sm:%s266] %v331
                  %v333 = vld [vmem:[%s273 + $0xe8] sm:%s266]
                  %334 = vst [vmem:[%s274 + $0x74] sm:%s266] %v333
                  %v335 = vld [vmem:[%s273 + $0xf0] sm:%s266]
                  %336 = vst [vmem:[%s274 + $0x78] sm:%s266] %v335
                  %v337 = vld [vmem:[%s273 + $0xf8] sm:%s266]
                  %338 = vst [vmem:[%s274 + $0x7c] sm:%s266] %v337
                $region59: #{patch_embed_forward.1} parent=46 // loop_footer
                  %s272 = sadd.s32 1, %s268
                $region60: #{patch_embed_forward.1} parent=46 // loop_footer_branch
                  %267 = sbr.rel target = $region56
                $region61: #{patch_embed_forward.1} parent=46 // loop_exit
                  _
              $region47: #{patch_embed_forward.1} parent=31 // pred_fallthru
                _
            $region32: #{patch_embed_forward.1} parent=27 // pred_fallthru
              _
            // Predicated region
            $region33: #{patch_embed_forward.1} parent=27 // pred_check
              _
            $region34: #{patch_embed_forward.1} parent=27 // pred_check_branch
              %180 = sbr.rel (0) target = $region36
            $region35: #{patch_embed_forward.1} parent=27 // pred_region
              %s182 = ssub.s32 16, 1
              loop: start=0, step=1, limit=1
              $region37: #{patch_embed_forward.1} parent=35 // loop_pre_header
                _
              $region38: #{patch_embed_forward.1} parent=35 // loop_header
                %s184 = sphi 0, %s188
                %p185 = scmp.ge.s32.totalorder %s184, 1
                %s189 = sphi %s174, %s174
                %s190 = sphi %s172, %s172
              $region39: #{patch_embed_forward.1} parent=35 // loop_header_branch
                %187 = sbr.rel (%p185) target = $region43
              $region40: #{patch_embed_forward.1} parent=35 // loop_body
                %v191 = vld [vmem:[%s189] sm:%s182]
                %192 = vst [vmem:[%s190] sm:%s182] %v191
                %v193 = vld [vmem:[%s189 + $0x8] sm:%s182]
                %194 = vst [vmem:[%s190 + $0x4] sm:%s182] %v193
                %v195 = vld [vmem:[%s189 + $0x10] sm:%s182]
                %196 = vst [vmem:[%s190 + $0x8] sm:%s182] %v195
                %v197 = vld [vmem:[%s189 + $0x18] sm:%s182]
                %198 = vst [vmem:[%s190 + $0xc] sm:%s182] %v197
                %v199 = vld [vmem:[%s189 + $0x20] sm:%s182]
                %200 = vst [vmem:[%s190 + $0x10] sm:%s182] %v199
                %v201 = vld [vmem:[%s189 + $0x28] sm:%s182]
                %202 = vst [vmem:[%s190 + $0x14] sm:%s182] %v201
                %v203 = vld [vmem:[%s189 + $0x30] sm:%s182]
                %204 = vst [vmem:[%s190 + $0x18] sm:%s182] %v203
                %v205 = vld [vmem:[%s189 + $0x38] sm:%s182]
                %206 = vst [vmem:[%s190 + $0x1c] sm:%s182] %v205
                %v207 = vld [vmem:[%s189 + $0x40] sm:%s182]
                %208 = vst [vmem:[%s190 + $0x20] sm:%s182] %v207
                %v209 = vld [vmem:[%s189 + $0x48] sm:%s182]
                %210 = vst [vmem:[%s190 + $0x24] sm:%s182] %v209
                %v211 = vld [vmem:[%s189 + $0x50] sm:%s182]
                %212 = vst [vmem:[%s190 + $0x28] sm:%s182] %v211
                %v213 = vld [vmem:[%s189 + $0x58] sm:%s182]
                %214 = vst [vmem:[%s190 + $0x2c] sm:%s182] %v213
                %v215 = vld [vmem:[%s189 + $0x60] sm:%s182]
                %216 = vst [vmem:[%s190 + $0x30] sm:%s182] %v215
                %v217 = vld [vmem:[%s189 + $0x68] sm:%s182]
                %218 = vst [vmem:[%s190 + $0x34] sm:%s182] %v217
                %v219 = vld [vmem:[%s189 + $0x70] sm:%s182]
                %220 = vst [vmem:[%s190 + $0x38] sm:%s182] %v219
                %v221 = vld [vmem:[%s189 + $0x78] sm:%s182]
                %222 = vst [vmem:[%s190 + $0x3c] sm:%s182] %v221
                %v223 = vld [vmem:[%s189 + $0x80] sm:%s182]
                %224 = vst [vmem:[%s190 + $0x40] sm:%s182] %v223
                %v225 = vld [vmem:[%s189 + $0x88] sm:%s182]
                %226 = vst [vmem:[%s190 + $0x44] sm:%s182] %v225
                %v227 = vld [vmem:[%s189 + $0x90] sm:%s182]
                %228 = vst [vmem:[%s190 + $0x48] sm:%s182] %v227
                %v229 = vld [vmem:[%s189 + $0x98] sm:%s182]
                %230 = vst [vmem:[%s190 + $0x4c] sm:%s182] %v229
                %v231 = vld [vmem:[%s189 + $0xa0] sm:%s182]
                %232 = vst [vmem:[%s190 + $0x50] sm:%s182] %v231
                %v233 = vld [vmem:[%s189 + $0xa8] sm:%s182]
                %234 = vst [vmem:[%s190 + $0x54] sm:%s182] %v233
                %v235 = vld [vmem:[%s189 + $0xb0] sm:%s182]
                %236 = vst [vmem:[%s190 + $0x58] sm:%s182] %v235
                %v237 = vld [vmem:[%s189 + $0xb8] sm:%s182]
                %238 = vst [vmem:[%s190 + $0x5c] sm:%s182] %v237
                %v239 = vld [vmem:[%s189 + $0xc0] sm:%s182]
                %240 = vst [vmem:[%s190 + $0x60] sm:%s182] %v239
                %v241 = vld [vmem:[%s189 + $0xc8] sm:%s182]
                %242 = vst [vmem:[%s190 + $0x64] sm:%s182] %v241
                %v243 = vld [vmem:[%s189 + $0xd0] sm:%s182]
                %244 = vst [vmem:[%s190 + $0x68] sm:%s182] %v243
                %v245 = vld [vmem:[%s189 + $0xd8] sm:%s182]
                %246 = vst [vmem:[%s190 + $0x6c] sm:%s182] %v245
                %v247 = vld [vmem:[%s189 + $0xe0] sm:%s182]
                %248 = vst [vmem:[%s190 + $0x70] sm:%s182] %v247
                %v249 = vld [vmem:[%s189 + $0xe8] sm:%s182]
                %250 = vst [vmem:[%s190 + $0x74] sm:%s182] %v249
                %v251 = vld [vmem:[%s189 + $0xf0] sm:%s182]
                %252 = vst [vmem:[%s190 + $0x78] sm:%s182] %v251
                %v253 = vld [vmem:[%s189 + $0xf8] sm:%s182]
                %254 = vst [vmem:[%s190 + $0x7c] sm:%s182] %v253
              $region41: #{patch_embed_forward.1} parent=35 // loop_footer
                %s188 = sadd.s32 1, %s184
              $region42: #{patch_embed_forward.1} parent=35 // loop_footer_branch
                %183 = sbr.rel target = $region38
              $region43: #{patch_embed_forward.1} parent=35 // loop_exit
                _
            $region36: #{patch_embed_forward.1} parent=27 // pred_fallthru
              _
          $region28: #{patch_embed_forward.1} parent=23 // pred_fallthru
            _
          %339 = vnop
        $region24: #{patch_embed_forward.1} parent=15 // pred_fallthru
          _
        // Predicated region
        $region62: #{patch_embed_forward.1} parent=15 // pred_check
          %p340 = pneg %p93
        $region63: #{patch_embed_forward.1} parent=15 // pred_check_branch
          %342 = sbr.rel (%p340) target = $region65
        $region64: #{patch_embed_forward.1} parent=15 // pred_region
          %p343 = scmp.lt.s32.totalorder %s17, 1
          %s344 = scalar_select %p343, %s17, 1
          %s345 = scalar_lea.vmem %s2, %s344
        $region65: #{patch_embed_forward.1} parent=15 // pred_fallthru
          _
      $region16: #{patch_embed_forward.1} parent=5 // pred_fallthru
        _
      %p346 = scmp.le.s32.totalorder 1, %s9
      %p347 = scmp.lt.s32.totalorder %s9, 7
      %p348 = pnand %p346, %p347
      %p349 = pneg %p348
      // Predicated region
      $region66: #{patch_embed_forward.1} parent=5 // pred_check
        _
      $region67: #{patch_embed_forward.1} parent=5 // pred_check_branch
        %351 = sbr.rel (%p348) target = $region69
      $region68: #{patch_embed_forward.1} parent=5 // pred_region
        %s352 = ssub.s32 %s9, 1
        %s353 = sand.u32 %s60, 1
        %s354 = sand.u32 %s60, 1
        %s355 = smul.addr %s354, 128
        %s356 = scalar_lea.vmem [#allocation2], %s355
        // Predicated region
        $region70: #{patch_embed_forward.1} parent=68 // pred_check
          %p357 = pneg %p73
        $region71: #{patch_embed_forward.1} parent=68 // pred_check_branch
          %359 = sbr.rel (%p357) target = $region73
        $region72: #{patch_embed_forward.1} parent=68 // pred_region
          _
        $region73: #{patch_embed_forward.1} parent=68 // pred_fallthru
          _
        %s360 = smul.u32 2, %s18
        %s361 = ssub.s32 5, %s360
        %p362 = scmp.lt.s32.totalorder %s361, 2
        %s363 = scalar_select %p362, %s361, 2
        %s364 = smul.u32 4, %s363
        %s365 = smul.u32 %s364, 2
        %p366 = scmp.lt.s32.totalorder %s360, 4
        %s367 = scalar_select %p366, %s360, 4
        %s368 = smul.addr %s367, 2
        %s369 = smul.addr %s368, 4
        %s370 = scalar_lea.vmem %s0, %s369
        %p371 = pneg %p47
        %p372 = pneg %p44
        %s373 = sand.u32 %s60, 1
        %s374 = sand.u32 %s60, 1
        %s375 = smul.addr %s374, 128
        %s376 = scalar_lea.vmem [#allocation2], %s375
        %p377 = pneg %p73
        %p378 = pneg %p70
        %p379 = scmp.lt.s32.totalorder %s19, 1
        %s380 = scalar_select %p379, %s19, 1
        %s381 = scalar_lea.vmem %s2, %s380
        %p382 = pneg %p99
        %p383 = pneg %p96
        %p384 = pneg %p127
        %p385 = pneg %p124
        %s386 = sand.u32 %s114, 1
        %s387 = sand.u32 %s114, 1
        %s388 = smul.addr %s387, 16
        %s389 = scalar_lea.vmem [#allocation3], %s388
        %s390 = smul.u32 2, %s18
        %s391 = ssub.s32 5, %s390
        %p392 = scmp.lt.s32.totalorder %s391, 2
        %s393 = scalar_select %p392, %s391, 2
        %s394 = smul.u32 4, %s393
        %s395 = smul.u32 %s394, 2
        %p396 = scmp.lt.s32.totalorder %s390, 4
        %s397 = scalar_select %p396, %s390, 4
        %s398 = smul.addr %s397, 2
        %s399 = smul.addr %s398, 4
        %s400 = scalar_lea.vmem %s0, %s399
        %s401 = smul.u32 2, %s18
        %s402 = ssub.s32 5, %s401
        %p403 = scmp.lt.s32.totalorder %s402, 2
        %s404 = scalar_select %p403, %s402, 2
        %s405 = smul.u32 4, %s404
        %s406 = smul.u32 %s405, 2
        %p407 = scmp.lt.s32.totalorder %s19, 1
        %s408 = scalar_select %p407, %s19, 1
        %s409 = scalar_lea.vmem %s2, %s408
        %s410 = smul.u32 2, %s18
        %s411 = ssub.s32 5, %s410
        %p412 = scmp.lt.s32.totalorder %s411, 2
        %s413 = scalar_select %p412, %s411, 2
        %s414 = smul.u32 8, %s413
        %v415 = vld [vmem:[%s400] sm:$0xff]
        %v416 = vld [vmem:[%s400 + $0x8] sm:$0xff]
        %v417 = vld [vmem:[%s356] sm:$0xf]
        %v418 = vld [vmem:[%s356 + $0x4] sm:$0xf]
        %v419 = vld [vmem:[%s356 + $0x8] sm:$0xf]
        %v420 = vld [vmem:[%s356 + $0xc] sm:$0xf]
        %v421 = vld [vmem:[%s356 + $0x10] sm:$0xf]
        %v422 = vld [vmem:[%s356 + $0x14] sm:$0xf]
        %v423 = vld [vmem:[%s356 + $0x18] sm:$0xf]
        %v424 = vld [vmem:[%s356 + $0x1c] sm:$0xf]
        %v425 = vld [vmem:[%s356 + $0x20] sm:$0xf]
        %v426 = vld [vmem:[%s356 + $0x24] sm:$0xf]
        %v427 = vld [vmem:[%s356 + $0x28] sm:$0xf]
        %v428 = vld [vmem:[%s356 + $0x2c] sm:$0xf]
        %v429 = vld [vmem:[%s356 + $0x30] sm:$0xf]
        %v430 = vld [vmem:[%s356 + $0x34] sm:$0xf]
        %v431 = vld [vmem:[%s356 + $0x38] sm:$0xf]
        %v432 = vld [vmem:[%s356 + $0x3c] sm:$0xf]
        %v433 = vld [vmem:[%s356 + $0x40] sm:$0xf]
        %v434 = vld [vmem:[%s356 + $0x44] sm:$0xf]
        %v435 = vld [vmem:[%s356 + $0x48] sm:$0xf]
        %v436 = vld [vmem:[%s356 + $0x4c] sm:$0xf]
        %v437 = vld [vmem:[%s356 + $0x50] sm:$0xf]
        %v438 = vld [vmem:[%s356 + $0x54] sm:$0xf]
        %v439 = vld [vmem:[%s356 + $0x58] sm:$0xf]
        %v440 = vld [vmem:[%s356 + $0x5c] sm:$0xf]
        %v441 = vld [vmem:[%s356 + $0x60] sm:$0xf]
        %v442 = vld [vmem:[%s356 + $0x64] sm:$0xf]
        %v443 = vld [vmem:[%s356 + $0x68] sm:$0xf]
        %v444 = vld [vmem:[%s356 + $0x6c] sm:$0xf]
        %v445 = vld [vmem:[%s356 + $0x70] sm:$0xf]
        %v446 = vld [vmem:[%s356 + $0x74] sm:$0xf]
        %v447 = vld [vmem:[%s356 + $0x78] sm:$0xf]
        %v448 = vld [vmem:[%s356 + $0x7c] sm:$0xf]
        %v449 = vld [vmem:[%s409] sm:$0x1]
        %v451 = vperm.slane %v449, 0
        %v455 = vunpack.c.l.b16 %v415
        %v456 = vunpack.c.h.b16 %v415
        %v457 = vunpack.c.l.b16 %v416
        %v458 = vunpack.c.h.b16 %v416
        %v459 = vpack.c.b16 %v457, %v455
        %v460 = vpack.c.b16 %v458, %v456
        %v495 = vunpack.c.l.b16 %v417
        %v496 = vunpack.c.l.b16 %v418
        %v497 = vunpack.c.l.b16 %v419
        %v498 = vunpack.c.l.b16 %v420
        %v499 = vunpack.c.l.b16 %v421
        %v500 = vunpack.c.l.b16 %v422
        %v501 = vunpack.c.l.b16 %v423
        %v502 = vunpack.c.l.b16 %v424
        %v503 = vunpack.c.l.b16 %v425
        %v504 = vunpack.c.l.b16 %v426
        %v505 = vunpack.c.l.b16 %v427
        %v506 = vunpack.c.l.b16 %v428
        %v507 = vunpack.c.l.b16 %v429
        %v508 = vunpack.c.l.b16 %v430
        %v509 = vunpack.c.l.b16 %v431
        %v510 = vunpack.c.l.b16 %v432
        %v511 = vunpack.c.l.b16 %v433
        %v512 = vunpack.c.l.b16 %v434
        %v513 = vunpack.c.l.b16 %v435
        %v514 = vunpack.c.l.b16 %v436
        %v515 = vunpack.c.l.b16 %v437
        %v516 = vunpack.c.l.b16 %v438
        %v517 = vunpack.c.l.b16 %v439
        %v518 = vunpack.c.l.b16 %v440
        %v519 = vunpack.c.l.b16 %v441
        %v520 = vunpack.c.l.b16 %v442
        %v521 = vunpack.c.l.b16 %v443
        %v522 = vunpack.c.l.b16 %v444
        %v523 = vunpack.c.l.b16 %v445
        %v524 = vunpack.c.l.b16 %v446
        %v525 = vunpack.c.l.b16 %v447
        %v526 = vunpack.c.l.b16 %v448
        %v527 = vpack.c.b16 %v496, %v495
        %v528 = vpack.c.b16 %v498, %v497
        %v529 = vpack.c.b16 %v500, %v499
        %v530 = vpack.c.b16 %v502, %v501
        %v531 = vpack.c.b16 %v504, %v503
        %v532 = vpack.c.b16 %v506, %v505
        %v533 = vpack.c.b16 %v508, %v507
        %v534 = vpack.c.b16 %v510, %v509
        %v535 = vpack.c.b16 %v512, %v511
        %v536 = vpack.c.b16 %v514, %v513
        %v537 = vpack.c.b16 %v516, %v515
        %v538 = vpack.c.b16 %v518, %v517
        %v539 = vpack.c.b16 %v520, %v519
        %v540 = vpack.c.b16 %v522, %v521
        %v541 = vpack.c.b16 %v524, %v523
        %v542 = vpack.c.b16 %v526, %v525
        %559 = vmatpush.bf16.msra.mxu0 %v534
        %560 = vmatpush.bf16.msra.mxu0 %v533
        %561 = vmatpush.bf16.msra.mxu0 %v532
        %562 = vmatpush.bf16.msra.mxu0 %v531
        %563 = vmatpush.bf16.msra.mxu0 %v530
        %564 = vmatpush.bf16.msra.mxu0 %v529
        %565 = vmatpush.bf16.msra.mxu0 %v528
        %566 = vmatpush.bf16.msra.mxu0 %v527
        %567 = vmatmul.bf16.gmra.mxu0 %v459
        %v568 = vpop.f32.mrf.mxu0
        %v569 = vadd.f32 %v451, %v568
        %v570 = vpop.f32.mrf.mxu0
        %v571 = vadd.f32 %v451, %v570
        %572 = vdwg.mxu0
        %573 = vmatpush.bf16.msra.mxu0 %v542
        %574 = vmatpush.bf16.msra.mxu0 %v541
        %575 = vmatpush.bf16.msra.mxu0 %v540
        %576 = vmatpush.bf16.msra.mxu0 %v539
        %577 = vmatpush.bf16.msra.mxu0 %v538
        %578 = vmatpush.bf16.msra.mxu0 %v537
        %579 = vmatpush.bf16.msra.mxu0 %v536
        %580 = vmatpush.bf16.msra.mxu0 %v535
        %581 = vmatmul.bf16.gmra.mxu0 %v460
        %v582 = vpop.f32.mrf.mxu0
        %v583 = vadd.f32 %v569, %v582
        %v584 = vpop.f32.mrf.mxu0
        %v585 = vadd.f32 %v571, %v584
        %586 = vdwg.mxu0
        %587 = vst [vmem:[%s389] sm:$0xff] %v583
        %588 = vst [vmem:[%s389 + $0x8] sm:$0xff] %v585
        %s589 = sand.u32 %s114, 1
        %s590 = sand.u32 %s114, 1
        %s591 = smul.addr %s590, 16
        %s592 = scalar_lea.vmem [#allocation3], %s591
        // Predicated region
        $region74: #{patch_embed_forward.1} parent=68 // pred_check
          %p593 = pneg %p124
        $region75: #{patch_embed_forward.1} parent=68 // pred_check_branch
          %595 = sbr.rel (%p593) target = $region77
        $region76: #{patch_embed_forward.1} parent=68 // pred_region
          %s596 = smul.u32 2, %s18
          %s597 = ssub.s32 5, %s596
          %p598 = scmp.lt.s32.totalorder %s597, 2
          %s599 = scalar_select %p598, %s597, 2
          %s600 = smul.u32 8, %s599
          %p601 = scmp.ne.s32.totalorder 0, %s600
          %s602 = smul.addr %s596, 2
          %s603 = sadd.s32 %s19, %s602
          %s604 = smul.addr %s603, 8
          %s605 = scalar_lea.vmem %s3, %s604
          // Predicated region
          $region78: #{patch_embed_forward.1} parent=76 // pred_check
            %p606 = pneg %p601
          $region79: #{patch_embed_forward.1} parent=76 // pred_check_branch
            %608 = sbr.rel (%p606) target = $region81
          $region80: #{patch_embed_forward.1} parent=76 // pred_region
            // Predicated region
            $region82: #{patch_embed_forward.1} parent=80 // pred_check
              _
            $region83: #{patch_embed_forward.1} parent=80 // pred_check_branch
              %610 = sbr.rel (0) target = $region85
            $region84: #{patch_embed_forward.1} parent=80 // pred_region
              // Predicated region
              $region104: #{patch_embed_forward.1} parent=84 // pred_check
                _
              $region105: #{patch_embed_forward.1} parent=84 // pred_check_branch
                %662 = sbr.rel (0) target = $region107
              $region106: #{patch_embed_forward.1} parent=84 // pred_region
                %s663 = sshrl.u32 %s599, 1
                // While loop
                $region108: #{patch_embed_forward.1} parent=106 // loop_pre_header
                  _
                $region109: #{patch_embed_forward.1} parent=106 // loop_header
                  %s665 = sphi 0, %s667
                  %p666 = scmp.ge.s32.totalorder %s665, %s663
                  %s670 = sphi 0, %s679
                  %s671 = sphi %s592, %s682
                  %s672 = sphi %s605, %s683
                $region110: #{patch_embed_forward.1} parent=106 // loop_header_branch
                  %669 = sbr.rel (%p666) target = $region114
                $region111: #{patch_embed_forward.1} parent=106 // loop_body
                  %v673 = vld [vmem:[%s671] sm:$0xff]
                  %674 = vst [vmem:[%s672] sm:$0xff] %v673
                  %v675 = vld [vmem:[%s671 + $0x8] sm:$0xff]
                  %676 = vst [vmem:[%s672 + $0x10] sm:$0xff] %v675
                  %s677 = sadd.s32 1, %s670
                  %p678 = scmp.ge.s32.totalorder %s677, %s663
                  %s679 = scalar_select %p678, 0, %s677
                  %s680 = smul.u32 %s679, 16
                  %s681 = smul.u32 %s679, 32
                  %s682 = scalar_lea.vmem %s592, %s680 [#allocation3]
                  %s683 = scalar_lea.vmem %s605, %s681
                $region112: #{patch_embed_forward.1} parent=106 // loop_footer
                  %s667 = sadd.s32 %s665, 1
                $region113: #{patch_embed_forward.1} parent=106 // loop_footer_branch
                  %664 = sbr.rel target = $region109
                $region114: #{patch_embed_forward.1} parent=106 // loop_exit
                  _
                %s684 = sshrl.u32 %s599, 1
                %s685 = sand.u32 %s599, 1
                %s686 = smul.u32 %s684, 2
                %s687 = smul.u32 8, %s686
                %s688 = scalar_lea.vmem %s592, %s687 [#allocation3]
                %s689 = smul.u32 16, %s686
                %s690 = scalar_lea.vmem %s605, %s689
                // While loop
                $region115: #{patch_embed_forward.1} parent=106 // loop_pre_header
                  _
                $region116: #{patch_embed_forward.1} parent=106 // loop_header
                  %s692 = sphi 0, %s694
                  %p693 = scmp.ge.s32.totalorder %s692, %s685
                  %s697 = sphi 0, %s704
                  %s698 = sphi %s688, %s707
                  %s699 = sphi %s690, %s708
                $region117: #{patch_embed_forward.1} parent=106 // loop_header_branch
                  %696 = sbr.rel (%p693) target = $region121
                $region118: #{patch_embed_forward.1} parent=106 // loop_body
                  %v700 = vld [vmem:[%s698] sm:$0xff]
                  %701 = vst [vmem:[%s699] sm:$0xff] %v700
                  %s702 = sadd.s32 1, %s697
                  %p703 = scmp.ge.s32.totalorder %s702, %s685
                  %s704 = scalar_select %p703, 0, %s702
                  %s705 = smul.u32 %s704, 8
                  %s706 = smul.u32 %s704, 16
                  %s707 = scalar_lea.vmem %s688, %s705 [#allocation3]
                  %s708 = scalar_lea.vmem %s690, %s706
                $region119: #{patch_embed_forward.1} parent=106 // loop_footer
                  %s694 = sadd.s32 %s692, 1
                $region120: #{patch_embed_forward.1} parent=106 // loop_footer_branch
                  %691 = sbr.rel target = $region116
                $region121: #{patch_embed_forward.1} parent=106 // loop_exit
                  _
              $region107: #{patch_embed_forward.1} parent=84 // pred_fallthru
                _
              // Predicated region
              $region122: #{patch_embed_forward.1} parent=84 // pred_check
                _
              $region123: #{patch_embed_forward.1} parent=84 // pred_check_branch
                %710 = sbr.rel target = $region125
              $region124: #{patch_embed_forward.1} parent=84 // pred_region
                _
              $region125: #{patch_embed_forward.1} parent=84 // pred_fallthru
                _
            $region85: #{patch_embed_forward.1} parent=80 // pred_fallthru
              _
            // Predicated region
            $region86: #{patch_embed_forward.1} parent=80 // pred_check
              _
            $region87: #{patch_embed_forward.1} parent=80 // pred_check_branch
              %612 = sbr.rel target = $region89
            $region88: #{patch_embed_forward.1} parent=80 // pred_region
              %s614 = ssub.s32 256, 1
              %s615 = sshrl.u32 %s599, 1
              // While loop
              $region90: #{patch_embed_forward.1} parent=88 // loop_pre_header
                _
              $region91: #{patch_embed_forward.1} parent=88 // loop_header
                %s617 = sphi 0, %s619
                %p618 = scmp.ge.s32.totalorder %s617, %s615
                %s622 = sphi 0, %s631
                %s623 = sphi %s592, %s634
                %s624 = sphi %s605, %s635
              $region92: #{patch_embed_forward.1} parent=88 // loop_header_branch
                %621 = sbr.rel (%p618) target = $region96
              $region93: #{patch_embed_forward.1} parent=88 // loop_body
                %v625 = vld [vmem:[%s623] sm:%s614]
                %626 = vst [vmem:[%s624] sm:%s614] %v625
                %v627 = vld [vmem:[%s623 + $0x8] sm:%s614]
                %628 = vst [vmem:[%s624 + $0x10] sm:%s614] %v627
                %s629 = sadd.s32 1, %s622
                %p630 = scmp.ge.s32.totalorder %s629, %s615
                %s631 = scalar_select %p630, 0, %s629
                %s632 = smul.u32 %s631, 16
                %s633 = smul.u32 %s631, 32
                %s634 = scalar_lea.vmem %s592, %s632 [#allocation3]
                %s635 = scalar_lea.vmem %s605, %s633
              $region94: #{patch_embed_forward.1} parent=88 // loop_footer
                %s619 = sadd.s32 %s617, 1
              $region95: #{patch_embed_forward.1} parent=88 // loop_footer_branch
                %616 = sbr.rel target = $region91
              $region96: #{patch_embed_forward.1} parent=88 // loop_exit
                _
              %s636 = sshrl.u32 %s599, 1
              %s637 = sand.u32 %s599, 1
              %s638 = smul.u32 %s636, 2
              %s639 = smul.u32 8, %s638
              %s640 = scalar_lea.vmem %s592, %s639 [#allocation3]
              %s641 = smul.u32 16, %s638
              %s642 = scalar_lea.vmem %s605, %s641
              // While loop
              $region97: #{patch_embed_forward.1} parent=88 // loop_pre_header
                _
              $region98: #{patch_embed_forward.1} parent=88 // loop_header
                %s644 = sphi 0, %s646
                %p645 = scmp.ge.s32.totalorder %s644, %s637
                %s649 = sphi 0, %s656
                %s650 = sphi %s640, %s659
                %s651 = sphi %s642, %s660
              $region99: #{patch_embed_forward.1} parent=88 // loop_header_branch
                %648 = sbr.rel (%p645) target = $region103
              $region100: #{patch_embed_forward.1} parent=88 // loop_body
                %v652 = vld [vmem:[%s650] sm:%s614]
                %653 = vst [vmem:[%s651] sm:%s614] %v652
                %s654 = sadd.s32 1, %s649
                %p655 = scmp.ge.s32.totalorder %s654, %s637
                %s656 = scalar_select %p655, 0, %s654
                %s657 = smul.u32 %s656, 8
                %s658 = smul.u32 %s656, 16
                %s659 = scalar_lea.vmem %s640, %s657 [#allocation3]
                %s660 = scalar_lea.vmem %s642, %s658
              $region101: #{patch_embed_forward.1} parent=88 // loop_footer
                %s646 = sadd.s32 %s644, 1
              $region102: #{patch_embed_forward.1} parent=88 // loop_footer_branch
                %643 = sbr.rel target = $region98
              $region103: #{patch_embed_forward.1} parent=88 // loop_exit
                _
            $region89: #{patch_embed_forward.1} parent=80 // pred_fallthru
              _
          $region81: #{patch_embed_forward.1} parent=76 // pred_fallthru
            _
          %711 = vnop
        $region77: #{patch_embed_forward.1} parent=68 // pred_fallthru
          _
      $region69: #{patch_embed_forward.1} parent=5 // pred_fallthru
        _
      %p712 = scmp.le.s32.totalorder 2, %s9
      // Predicated region
      $region126: #{patch_embed_forward.1} parent=5 // pred_check
        %p713 = pneg %p712
      $region127: #{patch_embed_forward.1} parent=5 // pred_check_branch
        %715 = sbr.rel (%p713) target = $region129
      $region128: #{patch_embed_forward.1} parent=5 // pred_region
        %s716 = ssub.s32 %s9, 2
        // Predicated region
        $region130: #{patch_embed_forward.1} parent=128 // pred_check
          %p717 = pneg %p130
        $region131: #{patch_embed_forward.1} parent=128 // pred_check_branch
          %719 = sbr.rel (%p717) target = $region133
        $region132: #{patch_embed_forward.1} parent=128 // pred_region
          %s720 = sand.u32 %s115, 1
          %s721 = sand.u32 %s115, 1
          %s722 = smul.addr %s721, 16
          %s723 = scalar_lea.vmem [#allocation3], %s722
        $region133: #{patch_embed_forward.1} parent=128 // pred_fallthru
          _
      $region129: #{patch_embed_forward.1} parent=5 // pred_fallthru
        _
    $region6: #{patch_embed_forward.1} parent=1 // loop_footer
      %s13 = sadd.s32 1, %s9
    $region7: #{patch_embed_forward.1} parent=1 // loop_footer_branch
      %8 = sbr.rel target = $region3
    $region8: #{patch_embed_forward.1} parent=1 // loop_exit
      _

</llo_original>
